<compile_context>
chip_gen: v7x
topology: tpu7x:2x2x1
jax: 0.10.0
libtpu: 0.0.40
codegen_flags: <defaults>
</compile_context>

<pallas_src>
import jax
import jax.numpy as jnp
from jax.experimental import pallas as pl
from jax.experimental.pallas import tpu as pltpu

# Deterministic "parameters" from SLayer.__init__ defaults (no learnable weights).
R_INDEX_NUM = 0
R_CS = 0.3
R_C = 6.0
_INV_RANGE = 1.0 / (R_C - R_CS)


def slayer_kernel(mark_ref, x_ref, o_ref):
    x = x_ref[...]                                  # (tb, td) f32 tile
    r = mark_ref[...]                               # (tb, 1) ORIGINAL marker column
    m1 = r < R_CS                                   # (tb, 1) row masks
    m3 = r > R_C
    m2 = jnp.logical_not(jnp.logical_and(m3, m1))   # all-True with defaults, exactly like PyTorch

    # Hoist the lane broadcasts once per tile (JAX does not CSE broadcast_in_dim).
    m1b = jnp.broadcast_to(m1, x.shape)
    m2b = jnp.broadcast_to(m2, x.shape)
    m3b = jnp.broadcast_to(m3, x.shape)

    # Single reciprocal per element:
    #   step 1:  y   = where(m1, 1/x, x)
    #   step 2 needs 1/y = where(m1, x, 1/x)  -> reuse inv instead of a 2nd divide.
    inv = 1.0 / x
    y = jnp.where(m1b, inv, x)
    recip_y = jnp.where(m1b, x, inv)

    w = 0.5 * jnp.cos(jnp.pi * (y - R_CS) * _INV_RANGE) + 0.5
    y = jnp.where(m2b, recip_y * w, y)              # step 2 reads step 1's result
    y = jnp.where(m3b, 0.0, y)                      # step 3
    o_ref[...] = y


def _round_up(a, b):
    return (a + b - 1) // b * b


def slayer(x):
    """Pallas SLayer forward. x: (B, D) float32, any B >= 1, D >= 1."""
    B, D = x.shape

    # Lane-dense feature tiling: pad D to a multiple of 128, tile at most 512 lanes.
    D_pad = _round_up(D, 128)
    td = min(D_pad, 512)

    # Batch tile sized for ~1-2 MiB per (tb, td) f32 buffer, multiple of 8,
    # never over-tiling a small batch. Total double-buffered footprint stays
    # well under the default scoped VMEM on v5e/v6e/v7x.
    tb = min(2048, max(8, (2 * 1024 * 1024 // (td * 4)) // 8 * 8))
    B8 = _round_up(B, 8)
    if tb > B8:
        tb = B8
    B_pad = _round_up(B, tb)

    xp = x
    if (B_pad, D_pad) != (B, D):
        # Pad with 1.0 (finite, middle-branch values); padded region is sliced off.
        xp = jnp.pad(x, ((0, B_pad - B), (0, D_pad - D)), constant_values=1.0)

    mark = xp[:, R_INDEX_NUM:R_INDEX_NUM + 1]       # (B_pad, 1) original marker column

    out = pl.pallas_call(
        slayer_kernel,
        out_shape=jax.ShapeDtypeStruct((B_pad, D_pad), x.dtype),
        grid_spec=pltpu.PrefetchScalarGridSpec(
            num_scalar_prefetch=0,
            grid=(B_pad // tb, D_pad // td),
            in_specs=[
                pl.BlockSpec((tb, 1), lambda i, j: (i, 0)),    # marker: same for every D tile
                pl.BlockSpec((tb, td), lambda i, j: (i, j)),   # x tile
            ],
            out_specs=pl.BlockSpec((tb, td), lambda i, j: (i, j)),
        ),
        compiler_params=pltpu.CompilerParams(
            dimension_semantics=("parallel", "parallel")),
    )(mark, xp)

    if (B_pad, D_pad) != (B, D):
        out = out[:B, :D]
    return out


def slayer_ref(x):
    """Pure-JAX reference mirroring the in-place PyTorch updates."""
    r_mark = x[:, R_INDEX_NUM]
    m1 = (r_mark < R_CS)[:, None]
    m3 = (r_mark > R_C)[:, None]
    m2 = ~(m3 & m1)
    y = jnp.where(m1, 1.0 / x, x)
    y = jnp.where(m2, (1.0 / y) * (0.5 * jnp.cos(jnp.pi * (y - R_CS) / (R_C - R_CS)) + 0.5), y)
    y = jnp.where(m3, 0.0, y)
    return y


if __name__ == "__main__":
    key = jax.random.PRNGKey(0)

    # Small shape consistent with the module's (N, features) convention; values in
    # (0.1, 8.0) so all three branches (marker < 0.3, > 6.0, middle) occur.
    B, D = 16, 32
    x = jax.random.uniform(key, (B, D), dtype=jnp.float32, minval=0.1, maxval=8.0)
    out = slayer(x)
    jax.block_until_ready(out)
    ref = slayer_ref(x)
    assert out.shape == x.shape and out.dtype == x.dtype
    assert jnp.allclose(out, ref, rtol=1e-5, atol=1e-5), "Pallas output mismatch vs reference"

    # Second check: non-aligned shape exercising the padding / slicing path.
    B2, D2 = 37, 200
    x2 = jax.random.uniform(jax.random.PRNGKey(1), (B2, D2), dtype=jnp.float32,
                            minval=0.1, maxval=8.0)
    out2 = slayer(x2)
    jax.block_until_ready(out2)
    ref2 = slayer_ref(x2)
    assert out2.shape == x2.shape
    assert jnp.allclose(out2, ref2, rtol=1e-5, atol=1e-5), "Pallas output mismatch (padded path)"

    print("KERNEL_OK")
</pallas_src>

<mosaic_0001>
module attributes {stable_mosaic.version = 11 : i64} {
  func.func @slayer_kernel(%arg0: i32, %arg1: i32, %arg2: memref<16x1xf32, #tpu.memory_space<vmem>>, %arg3: memref<16x128xf32, #tpu.memory_space<vmem>>, %arg4: memref<16x128xf32, #tpu.memory_space<vmem>>) attributes {dimension_semantics = [#tpu.dimension_semantics<parallel>, #tpu.dimension_semantics<parallel>], iteration_bounds = array<i64: 1, 1>, scalar_prefetch = 0 : i64, scratch_operands = 0 : i64, tpu.core_type = #tpu.core_type<tc>, window_params = [{transform_indices = @transform_0, window_bounds = array<i64: 16, 1>}, {transform_indices = @transform_1, window_bounds = array<i64: 16, 128>}, {transform_indices = @transform_2, window_bounds = array<i64: 16, 128>}]} {
    %c0 = arith.constant 0 : index
    %c0_0 = arith.constant 0 : index
    %0 = vector.load %arg3[%c0, %c0_0] : memref<16x128xf32, #tpu.memory_space<vmem>>, vector<16x128xf32>
    %c0_1 = arith.constant 0 : index
    %c0_2 = arith.constant 0 : index
    %1 = vector.load %arg2[%c0_1, %c0_2] : memref<16x1xf32, #tpu.memory_space<vmem>>, vector<16x1xf32>
    %cst = arith.constant 3.000000e-01 : f32
    %2 = vector.broadcast %cst : f32 to vector<16x1xf32>
    %3 = arith.cmpf olt, %1, %2 : vector<16x1xf32>
    %cst_3 = arith.constant 6.000000e+00 : f32
    %4 = vector.broadcast %cst_3 : f32 to vector<16x1xf32>
    %5 = arith.cmpf ogt, %1, %4 : vector<16x1xf32>
    %6 = arith.andi %5, %3 : vector<16x1xi1>
    %cst_4 = arith.constant dense<true> : vector<16x1xi1>
    %7 = arith.xori %6, %cst_4 : vector<16x1xi1>
    %8 = vector.shape_cast %3 : vector<16x1xi1> to vector<16x1xi1>
    %9 = vector.broadcast %8 : vector<16x1xi1> to vector<16x128xi1>
    %10 = vector.shape_cast %7 : vector<16x1xi1> to vector<16x1xi1>
    %11 = vector.broadcast %10 : vector<16x1xi1> to vector<16x128xi1>
    %12 = vector.shape_cast %5 : vector<16x1xi1> to vector<16x1xi1>
    %13 = vector.broadcast %12 : vector<16x1xi1> to vector<16x128xi1>
    %cst_5 = arith.constant 1.000000e+00 : f32
    %14 = vector.broadcast %cst_5 : f32 to vector<16x128xf32>
    %15 = arith.divf %14, %0 : vector<16x128xf32>
    %16 = arith.select %9, %15, %0 : vector<16x128xi1>, vector<16x128xf32>
    %17 = arith.select %9, %0, %15 : vector<16x128xi1>, vector<16x128xf32>
    %cst_6 = arith.constant 3.000000e-01 : f32
    %18 = vector.broadcast %cst_6 : f32 to vector<16x128xf32>
    %19 = arith.subf %16, %18 : vector<16x128xf32>
    %cst_7 = arith.constant 3.14159274 : f32
    %20 = vector.broadcast %cst_7 : f32 to vector<16x128xf32>
    %21 = arith.mulf %20, %19 : vector<16x128xf32>
    %cst_8 = arith.constant 0.175438598 : f32
    %22 = vector.broadcast %cst_8 : f32 to vector<16x128xf32>
    %23 = arith.mulf %21, %22 : vector<16x128xf32>
    %24 = math.cos %23 : vector<16x128xf32>
    %cst_9 = arith.constant 5.000000e-01 : f32
    %25 = vector.broadcast %cst_9 : f32 to vector<16x128xf32>
    %26 = arith.mulf %25, %24 : vector<16x128xf32>
    %cst_10 = arith.constant 5.000000e-01 : f32
    %27 = vector.broadcast %cst_10 : f32 to vector<16x128xf32>
    %28 = arith.addf %26, %27 : vector<16x128xf32>
    %29 = arith.mulf %17, %28 : vector<16x128xf32>
    %30 = arith.select %11, %29, %16 : vector<16x128xi1>, vector<16x128xf32>
    %cst_11 = arith.constant 0.000000e+00 : f32
    %31 = vector.broadcast %cst_11 : f32 to vector<16x128xf32>
    %32 = arith.select %13, %31, %30 : vector<16x128xi1>, vector<16x128xf32>
    %c0_12 = arith.constant 0 : index
    %c0_13 = arith.constant 0 : index
    %33 = vector.load %arg4[%c0_12, %c0_13] : memref<16x128xf32, #tpu.memory_space<vmem>>, vector<16x128xf32>
    tpu.vector_store %arg4[%c0_12, %c0_13], %32 {strides = array<i32>} : memref<16x128xf32, #tpu.memory_space<vmem>>, vector<16x128xf32>,
    return
  }
  func.func @transform_0(%arg0: i32, %arg1: i32) -> (i32, i32) {
    %c0_i32 = arith.constant 0 : i32
    %c0_i32_0 = arith.constant 0 : i32
    return %arg0, %c0_i32 : i32, i32
  }
  func.func @transform_1(%arg0: i32, %arg1: i32) -> (i32, i32) {
    %c0_i32 = arith.constant 0 : i32
    return %arg0, %arg1 : i32, i32
  }
  func.func @transform_2(%arg0: i32, %arg1: i32) -> (i32, i32) {
    %c0_i32 = arith.constant 0 : i32
    return %arg0, %arg1 : i32, i32
  }
}

</mosaic_0001>

<llo_original>
// kernel: tpu_custom_call.1
$region0: #{tpu_custom_call.1}
  #allocation0 [shape = 'u32[]', space=smem, size = 0x4, offset = 0x4, fixed_abs, tag = 'smem constant byte address 0x4 - core index']
  #allocation1 [shape = 'u32[144,128]{1,0:T(1,128)}', space=vmem, size = 0x12000, scoped, tag = 'internal scratch']
  %s0 = inlined_call_operand.vmem [shape: f32[16,1], index: 0, kind: input, shape index: {}]
  %s1 = inlined_call_operand.vmem [shape: f32[16,128], index: 1, kind: input, shape index: {}]
  %s2 = inlined_call_operand.hbm [shape: f32[16,128], index: 2, kind: output, shape index: {}]
  %s3 = sld [smem:[#allocation0]]
  $region18: #{tpu_custom_call.1} parent=0
    _
  %s5 = ssub.s32 1, %s3
  %s6 = scalar_select 0, %s5, %s3
  $region1: #{tpu_custom_call.1} parent=0
    #allocation2 [shape = 'u8[8192]{0}', space=vmem, size = 0x2000, scoped, tag = 'output window, operand 0, single buffered']
    #allocation3 [shape = 's32[1]{0}', space=sflag, size = 0x4, scoped, tag = 'scoped memory for tpu_custom_call.1']
    %7 = vsyncpa [#allocation3], 0
    // Predicated region
    $region2: #{tpu_custom_call.1} parent=1 // pred_check
      _
    $region3: #{tpu_custom_call.1} parent=1 // pred_check_branch
      %9 = sbr.rel (0) target = $region5
    $region4: #{tpu_custom_call.1} parent=1 // pred_region
      _
    $region5: #{tpu_custom_call.1} parent=1 // pred_fallthru
      _
    // Predicated region
    $region6: #{tpu_custom_call.1} parent=1 // pred_check
      _
    $region7: #{tpu_custom_call.1} parent=1 // pred_check_branch
      %11 = sbr.rel (0) target = $region9
    $region8: #{tpu_custom_call.1} parent=1 // pred_region
      _
    $region9: #{tpu_custom_call.1} parent=1 // pred_fallthru
      _
    %v12 = vld [vmem:[%s1] sm:$0xff]
    %v13 = vld [vmem:[%s1 + $0x8] sm:$0xff]
    %v14 = vld [vmem:[%s0] sm:$0xff]
    %v15 = vld [vmem:[%s0 + $0x8] sm:$0xff]
    %vm16 = vcmp.lt.f32.partialorder %v14, 0.3
    %vm17 = vcmp.lt.f32.partialorder %v15, 0.3
    %vm18 = vcmp.gt.f32.partialorder %v14, 6.0
    %vm19 = vcmp.gt.f32.partialorder %v15, 6.0
    %vm20 = vmand %vm18, %vm16
    %vm21 = vmand %vm19, %vm17
    %vm22 = vmxor %vm20, 1
    %vm23 = vmxor %vm21, 1
    %v24 = vsel %vm16, 1, 0
    %v25 = vsel %vm17, 1, 0
    %26 = vset.pattern.permute.xlu0 0
    %27 = vperm.xlu0 %26, %v24
    %v28 = vpop.permute.xlu0 %27
    %29 = vset.pattern.permute.xlu0 0
    %30 = vperm.xlu0 %29, %v25
    %v31 = vpop.permute.xlu0 %30
    %vm32 = vcmp.eq.s32.totalorder %v28, 1
    %vm33 = vcmp.eq.s32.totalorder %v31, 1
    %v34 = vsel %vm22, 1, 0
    %v35 = vsel %vm23, 1, 0
    %36 = vset.pattern.permute.xlu0 0
    %37 = vperm.xlu0 %36, %v34
    %v38 = vpop.permute.xlu0 %37
    %39 = vset.pattern.permute.xlu0 0
    %40 = vperm.xlu0 %39, %v35
    %v41 = vpop.permute.xlu0 %40
    %vm42 = vcmp.eq.s32.totalorder %v38, 1
    %vm43 = vcmp.eq.s32.totalorder %v41, 1
    %v44 = vsel %vm18, 1, 0
    %v45 = vsel %vm19, 1, 0
    %46 = vset.pattern.permute.xlu0 0
    %47 = vperm.xlu0 %46, %v44
    %v48 = vpop.permute.xlu0 %47
    %49 = vset.pattern.permute.xlu0 0
    %50 = vperm.xlu0 %49, %v45
    %v51 = vpop.permute.xlu0 %50
    %vm52 = vcmp.eq.s32.totalorder %v48, 1
    %vm53 = vcmp.eq.s32.totalorder %v51, 1
    %v54 = vrcp.pop %v12
    %v55 = vmul.f32 1.0, %v54
    %v56 = vrcp.pop %v13
    %v57 = vmul.f32 1.0, %v56
    %v58 = vsel %vm32, %v55, %v12
    %v59 = vsel %vm33, %v57, %v13
    %v60 = vsel %vm32, %v12, %v55
    %v61 = vsel %vm33, %v13, %v57
    %v62 = vsub.f32 %v58, 0.3
    %v63 = vsub.f32 %v59, 0.3
    %v64 = vmul.f32 %v62, 3.1415927
    %v65 = vmul.f32 %v63, 3.1415927
    %v66 = vmul.f32 %v64, 0.1754386
    %v67 = vmul.f32 %v65, 0.1754386
    %v68 = vand.u32 2147483647, %v66
    %vm69 = vcmp.le.f32.partialorder %v68, 0.7853982
    %vm70 = vcmp.lt.s32.totalorder %v66, 0
    %v71 = vand.u32 %v66, 2139095040
    %v72 = vshrl.u32 %v71, 23
    %v73 = vsub.s32 %v72, 127
    %v74 = vand.u32 2147483647, %v66
    %v75 = vand.u32 %v74, 8388607
    %v76 = vor.u32 %v75, 8388608
    %v77 = vsub.s32 0, %v76
    %v78 = vadd.s32 %v73, 1
    %vm79 = vcmp.gt.s32.totalorder %v78, 0
    %v80 = vsel %vm79, %v78, 0
    %v81 = vshrl.u32 %v80, 5
    %v82 = vand.u32 %v80, 31
    %v83 = vsub.s32 32, %v82
    %v84 = vshrl.u32 683565275, %v83
    %v85 = vshll.u32 683565275, %v82
    %v86 = vshrl.u32 2475754826, %v83
    %v87 = vor.u32 %v85, %v86
    %v88 = vshll.u32 2475754826, %v82
    %v89 = vshrl.u32 2131351028, %v83
    %v90 = vor.u32 %v88, %v89
    %v91 = vshll.u32 2131351028, %v82
    %v92 = vshrl.u32 2102212464, %v83
    %v93 = vor.u32 %v91, %v92
    %v94 = vshll.u32 2102212464, %v82
    %v95 = vshrl.u32 920167782, %v83
    %v96 = vor.u32 %v94, %v95
    %v97 = vshll.u32 920167782, %v82
    %v98 = vshrl.u32 1326507024, %v83
    %v99 = vor.u32 %v97, %v98
    %vm100 = vcmp.lt.s32.totalorder %v81, 1
    %vm101 = vcmp.lt.s32.totalorder %v81, 2
    %vm102 = vcmp.lt.s32.totalorder %v81, 3
    %vm103 = vcmp.lt.s32.totalorder %v81, 4
    %v104 = vsel %vm100, %v84, %v87
    %v105 = vsel %vm103, %v93, 2102212464
    %v106 = vsel %vm102, %v90, %v105
    %v107 = vsel %vm101, %v104, %v106
    %v108 = vsel %vm100, %v87, %v90
    %v109 = vsel %vm103, %v96, 920167782
    %v110 = vsel %vm102, %v93, %v109
    %v111 = vsel %vm101, %v108, %v110
    %v112 = vsel %vm100, %v90, %v93
    %v113 = vsel %vm103, %v99, 1326507024
    %v114 = vsel %vm102, %v96, %v113
    %v115 = vsel %vm101, %v112, %v114
    %v116 = vshll.u32 %v76, 8
    %v117 = vmul.u32.u64.compose %v116, %v115
    %v118 = vextract.low.u32 %v117
    %v119 = vextract.high.u32 %v117
    %v120 = vmul.u32.u64.compose %v116, %v111
    %v121 = vextract.low.u32 %v120
    %v122 = vextract.high.u32 %v120
    %v123 = vmul.u32 %v116, %v107
    %v124 = vadd.s32 %v119, %v121
    %vm125 = vc.u32 %v119, %v121
    %v126 = vadd.s32 %v122, 1
    %v127 = vsel %vm125, %v126, %v122
    %v128 = vadd.s32 %v123, %v127
    %v129 = vadd.s32 %v128, 536870912
    %v130 = vshrl.u32 %v129, 30
    %v131 = vshll.u32 %v130, 30
    %v132 = vsub.s32 %v128, %v131
    %vm133 = vcmp.lt.s32.totalorder %v132, 0
    %v134 = vsub.s32 0, %v132
    %v135 = vsel %vm133, %v134, %v132
    %v136 = vclz %v135
    %v137 = vsub.s32 %v136, 2
    %vm138 = vcmp.gt.s32.totalorder 0, %v137
    %v139 = vsel %vm138, 0, %v137
    %v140 = vsub.s32 32, %v139
    %v141 = vshll.u32 %v132, %v139
    %v142 = vshrl.u32 %v124, %v140
    %v143 = vor.u32 %v141, %v142
    %v144 = vsub.s32 4294967266, %v139
    %v145 = vadd.s32 %v144, 127
    %v146 = vshll.u32 %v145, 23
    %v147 = vor.u32 4788187, %v146
    %v148 = vand.u32 2147483647, %v147
    %v150 = vcvt.s32.f32 %v143
    %v151 = vmul.f32 %v150, %v148
    %v152 = vxor.u32 %v151, 2147483648
    %v153 = vsel %vm70, %v152, %v151
    %v154 = vsub.s32 4, %v130
    %v155 = vsel %vm70, %v154, %v130
    %v156 = vsel %vm69, %v66, %v153
    %v157 = vsel %vm69, 0, %v155
    %v158 = vcosq.f32.pop %v156
    %v159 = vsinq.f32.pop %v156
    %vm160 = vweird.f32 %v66
    %v161 = vand.u32 %v157, 3
    %vm162 = vcmp.lt.s32.totalorder %v161, 2
    %vm163 = vcmp.eq.s32.totalorder %v161, 0
    %v164 = vxor.u32 %v159, 2147483648
    %v165 = vsel %vm163, %v158, %v164
    %vm166 = vcmp.eq.s32.totalorder %v161, 2
    %v167 = vxor.u32 %v158, 2147483648
    %v168 = vsel %vm166, %v167, %v159
    %v169 = vsel %vm162, %v165, %v168
    %v170 = vsel %vm160, nan, %v169
    %v171 = vand.u32 2147483647, %v67
    %vm172 = vcmp.le.f32.partialorder %v171, 0.7853982
    %vm173 = vcmp.lt.s32.totalorder %v67, 0
    %v174 = vand.u32 %v67, 2139095040
    %v175 = vshrl.u32 %v174, 23
    %v176 = vsub.s32 %v175, 127
    %v177 = vand.u32 2147483647, %v67
    %v178 = vand.u32 %v177, 8388607
    %v179 = vor.u32 %v178, 8388608
    %v180 = vsub.s32 0, %v179
    %v181 = vadd.s32 %v176, 1
    %vm182 = vcmp.gt.s32.totalorder %v181, 0
    %v183 = vsel %vm182, %v181, 0
    %v184 = vshrl.u32 %v183, 5
    %v185 = vand.u32 %v183, 31
    %v186 = vsub.s32 32, %v185
    %v187 = vshrl.u32 683565275, %v186
    %v188 = vshll.u32 683565275, %v185
    %v189 = vshrl.u32 2475754826, %v186
    %v190 = vor.u32 %v188, %v189
    %v191 = vshll.u32 2475754826, %v185
    %v192 = vshrl.u32 2131351028, %v186
    %v193 = vor.u32 %v191, %v192
    %v194 = vshll.u32 2131351028, %v185
    %v195 = vshrl.u32 2102212464, %v186
    %v196 = vor.u32 %v194, %v195
    %v197 = vshll.u32 2102212464, %v185
    %v198 = vshrl.u32 920167782, %v186
    %v199 = vor.u32 %v197, %v198
    %v200 = vshll.u32 920167782, %v185
    %v201 = vshrl.u32 1326507024, %v186
    %v202 = vor.u32 %v200, %v201
    %vm203 = vcmp.lt.s32.totalorder %v184, 1
    %vm204 = vcmp.lt.s32.totalorder %v184, 2
    %vm205 = vcmp.lt.s32.totalorder %v184, 3
    %vm206 = vcmp.lt.s32.totalorder %v184, 4
    %v207 = vsel %vm203, %v187, %v190
    %v208 = vsel %vm206, %v196, 2102212464
    %v209 = vsel %vm205, %v193, %v208
    %v210 = vsel %vm204, %v207, %v209
    %v211 = vsel %vm203, %v190, %v193
    %v212 = vsel %vm206, %v199, 920167782
    %v213 = vsel %vm205, %v196, %v212
    %v214 = vsel %vm204, %v211, %v213
    %v215 = vsel %vm203, %v193, %v196
    %v216 = vsel %vm206, %v202, 1326507024
    %v217 = vsel %vm205, %v199, %v216
    %v218 = vsel %vm204, %v215, %v217
    %v219 = vshll.u32 %v179, 8
    %v220 = vmul.u32.u64.compose %v219, %v218
    %v221 = vextract.low.u32 %v220
    %v222 = vextract.high.u32 %v220
    %v223 = vmul.u32.u64.compose %v219, %v214
    %v224 = vextract.low.u32 %v223
    %v225 = vextract.high.u32 %v223
    %v226 = vmul.u32 %v219, %v210
    %v227 = vadd.s32 %v222, %v224
    %vm228 = vc.u32 %v222, %v224
    %v229 = vadd.s32 %v225, 1
    %v230 = vsel %vm228, %v229, %v225
    %v231 = vadd.s32 %v226, %v230
    %v232 = vadd.s32 %v231, 536870912
    %v233 = vshrl.u32 %v232, 30
    %v234 = vshll.u32 %v233, 30
    %v235 = vsub.s32 %v231, %v234
    %vm236 = vcmp.lt.s32.totalorder %v235, 0
    %v237 = vsub.s32 0, %v235
    %v238 = vsel %vm236, %v237, %v235
    %v239 = vclz %v238
    %v240 = vsub.s32 %v239, 2
    %vm241 = vcmp.gt.s32.totalorder 0, %v240
    %v242 = vsel %vm241, 0, %v240
    %v243 = vsub.s32 32, %v242
    %v244 = vshll.u32 %v235, %v242
    %v245 = vshrl.u32 %v227, %v243
    %v246 = vor.u32 %v244, %v245
    %v247 = vsub.s32 4294967266, %v242
    %v248 = vadd.s32 %v247, 127
    %v249 = vshll.u32 %v248, 23
    %v250 = vor.u32 4788187, %v249
    %v251 = vand.u32 2147483647, %v250
    %v253 = vcvt.s32.f32 %v246
    %v254 = vmul.f32 %v253, %v251
    %v255 = vxor.u32 %v254, 2147483648
    %v256 = vsel %vm173, %v255, %v254
    %v257 = vsub.s32 4, %v233
    %v258 = vsel %vm173, %v257, %v233
    %v259 = vsel %vm172, %v67, %v256
    %v260 = vsel %vm172, 0, %v258
    %v261 = vcosq.f32.pop %v259
    %v262 = vsinq.f32.pop %v259
    %vm263 = vweird.f32 %v67
    %v264 = vand.u32 %v260, 3
    %vm265 = vcmp.lt.s32.totalorder %v264, 2
    %vm266 = vcmp.eq.s32.totalorder %v264, 0
    %v267 = vxor.u32 %v262, 2147483648
    %v268 = vsel %vm266, %v261, %v267
    %vm269 = vcmp.eq.s32.totalorder %v264, 2
    %v270 = vxor.u32 %v261, 2147483648
    %v271 = vsel %vm269, %v270, %v262
    %v272 = vsel %vm265, %v268, %v271
    %v273 = vsel %vm263, nan, %v272
    %v274 = vmul.f32 %v170, 0.5
    %v275 = vmul.f32 %v273, 0.5
    %v276 = vadd.f32 %v274, 0.5
    %v277 = vadd.f32 %v275, 0.5
    %v278 = vmul.f32 %v60, %v276
    %v279 = vmul.f32 %v61, %v277
    %v280 = vsel %vm42, %v278, %v58
    %v281 = vsel %vm43, %v279, %v59
    %v282 = vsel %vm52, 0.0, %v280
    %v283 = vsel %vm53, 0.0, %v281
    %284 = vst [vmem:[#allocation2] sm:$0xff] %v282
    %285 = vst [vmem:[#allocation2 + $0x8] sm:$0xff] %v283
    // Predicated region
    $region10: #{tpu_custom_call.1} parent=1 // pred_check
      _
    $region11: #{tpu_custom_call.1} parent=1 // pred_check_branch
      %287 = sbr.rel (0) target = $region13
    $region12: #{tpu_custom_call.1} parent=1 // pred_region
      %s289 = ssub.s32 256, 256
      %290 = vsyncadd [#allocation3], %s289
      %s291 = sshll.u32 [#allocation2], 4
      %s292 = int_to_ptr.vmem [resolvable:$true] %s291
      %297 = dma.vmem_to_hbm [thread:$0]  %s292, 256, %s2, [#allocation3], 128, 128, 8
    $region13: #{tpu_custom_call.1} parent=1 // pred_fallthru
      _
    // Predicated region
    $region14: #{tpu_custom_call.1} parent=1 // pred_check
      _
    $region15: #{tpu_custom_call.1} parent=1 // pred_check_branch
      %299 = sbr.rel (0) target = $region17
    $region16: #{tpu_custom_call.1} parent=1 // pred_region
      %300 = dma.done [#allocation3], 256
    $region17: #{tpu_custom_call.1} parent=1 // pred_fallthru
      _
    %301 = vsyncpa [#allocation3], 1

</llo_original>
